<compile_context>
chip_gen: v7x
topology: tpu7x:2x2x1
jax: 0.10.0
libtpu: 0.0.40
codegen_flags: <defaults>
</compile_context>

<pallas_src>
import jax
import jax.numpy as jnp
from jax import lax
from jax.experimental import pallas as pl
from jax.experimental.pallas import tpu as pltpu


# --------------------------------------------------------------------------------------
# Kernel
# --------------------------------------------------------------------------------------
def _make_kernel(H):
    """Kernel closure over static image height H (row layout: (bb, H, W*C) per block)."""

    def kernel(x_ref, w1_ref, b1_ref, w2_ref, b2_ref, w3_ref, b3_ref, o_ref):
        # x_ref : (bb, H, W*Cin)     f32   lane-dense input slab (also the residual)
        # w1_ref: (W*Cin, W*P)       bf16  block-diagonal 1x1 conv, BN1 scale folded in
        # w2_ref: (3*W*P, W*P)       bf16  kh-concatenated banded 3x3 conv, BN2 folded in
        # w3_ref: (W*P, W*Cout)      bf16  block-diagonal 1x1 conv, BN3 scale folded in
        # b*_ref: (1, W*C)           f32   folded BN shifts (tiled over W)
        # o_ref : (bb, H, W*Cout)    f32   lane-dense output slab
        bb = x_ref.shape[0]
        M = bb * H
        x = x_ref[...].reshape(M, x_ref.shape[2])           # (M, W*Cin) f32 residual
        x_bf = x.astype(jnp.bfloat16)

        # ---- conv1 (1x1) + bn1 + relu : one dense matmul, f32 accumulation ----
        y = jnp.dot(x_bf, w1_ref[...], preferred_element_type=jnp.float32)
        y = jnp.maximum(y + b1_ref[...], 0.0)                # (M, W*P) f32

        # ---- conv2 (3x3, pad=1) + bn2 + relu : ONE fused matmul with K = 3*W*P ----
        # kw taps + zero padding along W are folded into the banded weights (host-side);
        # the kh (row) shift is a circular pltpu.roll over the fused M axis, with the
        # wrapped halo row of each image zeroed by a per-image row mask (no cross-image
        # leakage: only rows at image boundaries are masked, and exactly those wrap).
        row = lax.broadcasted_iota(jnp.int32, (M, 1), 0) % H
        y_up = jnp.where(row == 0, 0.0, pltpu.roll(y, shift=1, axis=0))        # y[h-1]
        y_dn = jnp.where(row == H - 1, 0.0, pltpu.roll(y, shift=M - 1, axis=0))  # y[h+1]
        y_cat = jnp.concatenate([y_up, y, y_dn], axis=1).astype(jnp.bfloat16)  # (M, 3*W*P)
        z = jnp.dot(y_cat, w2_ref[...], preferred_element_type=jnp.float32)
        z = jnp.maximum(z + b2_ref[...], 0.0).astype(jnp.bfloat16)             # (M, W*P)

        # ---- conv3 (1x1) + bn3 + residual add (f32) + relu ----
        o = jnp.dot(z, w3_ref[...], preferred_element_type=jnp.float32)
        o = jnp.maximum(o + b3_ref[...] + x, 0.0)
        o_ref[...] = o.reshape(o_ref.shape).astype(o_ref.dtype)   # lane-dense store

    return kernel


# --------------------------------------------------------------------------------------
# Block-size heuristic: fold batch into the matmul M dimension
# --------------------------------------------------------------------------------------
def _pick_block_b(B, H, target_rows=256, min_split_rows=64):
    """Images per grid step (M = bb * H).

    Prefer the largest divisor of B with bb*H <= target_rows (fills the MXU rows,
    fewest grid steps).  If that leaves a single grid step, fall back to >=2 steps
    (v7x has 2 TensorCores) only when each step still keeps M >= min_split_rows.
    """
    divisors = [d for d in range(1, B + 1) if B % d == 0]
    fits = [d for d in divisors if d * H <= target_rows] or [1]
    bb = max(fits)
    if B // bb < 2:
        split = [d for d in fits if B // d >= 2 and d * H >= min_split_rows]
        if split:
            bb = max(split)
    return bb


# --------------------------------------------------------------------------------------
# Wrapper: host-side weight prep (BN folding, banded/block-diag weights) + pallas_call
# --------------------------------------------------------------------------------------
def bottleneck_pallas(x_nchw, conv1_w, conv2_w, conv3_w, bn1, bn2, bn3, eps=1e-5):
    B, Cin, H, W = x_nchw.shape
    P = conv1_w.shape[0]
    Cout = conv3_w.shape[0]
    assert Cout == Cin, "downsample=None requires inplanes == planes * 4"

    def fold(bn):
        gamma, beta, mean, var = bn
        s = gamma / jnp.sqrt(var + eps)
        return s.astype(jnp.float32), (beta - mean * s).astype(jnp.float32)

    s1, t1 = fold(bn1)
    s2, t2 = fold(bn2)
    s3, t3 = fold(bn3)

    eye_w = jnp.eye(W, dtype=jnp.float32)

    # conv1: (P, Cin, 1, 1) -> (Cin, P), fold BN1 scale, block-diagonal over W.
    w1 = conv1_w[:, :, 0, 0].T * s1[None, :]                             # (Cin, P)
    w1b = jnp.kron(eye_w, w1).astype(jnp.bfloat16)                       # (W*Cin, W*P)

    # conv2: OIHW -> [kh, kw, ci, co], fold BN2 scale, banded matrix per kh,
    # then concatenate the 3 kh blocks along K for the single fused matmul.
    w2 = jnp.transpose(conv2_w, (2, 3, 1, 0)) * s2[None, None, None, :]  # (3, 3, P, P)
    wi = jnp.arange(W)[:, None]
    wo = jnp.arange(W)[None, :]
    kw = wi - wo + 1                                                     # tap idx per (wi, wo)
    valid = (kw >= 0) & (kw <= 2)                                        # zero-pad along W
    blocks = jnp.where(valid[None, :, :, None, None],
                       w2[:, jnp.clip(kw, 0, 2), :, :], 0.0)             # (3, W, W, P, P)
    w2b = (blocks.transpose(0, 1, 3, 2, 4)
                 .reshape(3, W * P, W * P))                              # (3, W*P, W*P)
    w2cat = w2b.reshape(3 * W * P, W * P).astype(jnp.bfloat16)           # (3*W*P, W*P)

    # conv3: (Cout, P, 1, 1) -> (P, Cout), fold BN3 scale, block-diagonal over W.
    w3 = conv3_w[:, :, 0, 0].T * s3[None, :]                             # (P, Cout)
    w3b = jnp.kron(eye_w, w3).astype(jnp.bfloat16)                       # (W*P, W*Cout)

    # Folded BN shifts, tiled over W so they broadcast along the lane-dense layout.
    b1 = jnp.tile(t1, W)[None, :]                                        # (1, W*P)
    b2 = jnp.tile(t2, W)[None, :]                                        # (1, W*P)
    b3 = jnp.tile(t3, W)[None, :]                                        # (1, W*Cout)

    # Lane-dense activation layout: NCHW -> (B, H, W*Cin) with channels fastest per pixel.
    x_row = (jnp.transpose(x_nchw, (0, 2, 3, 1))
                .reshape(B, H, W * Cin).astype(jnp.float32))

    bb = _pick_block_b(B, H)
    n_blocks = B // bb
    kernel = _make_kernel(H)

    def full_spec(arr):
        n = arr.ndim
        return pl.BlockSpec(arr.shape, lambda b, _n=n: (0,) * _n)

    grid_spec = pltpu.PrefetchScalarGridSpec(
        num_scalar_prefetch=0,
        grid=(n_blocks,),
        in_specs=[
            pl.BlockSpec((bb, H, W * Cin), lambda b: (b, 0, 0)),
            full_spec(w1b), full_spec(b1),
            full_spec(w2cat), full_spec(b2),
            full_spec(w3b), full_spec(b3),
        ],
        out_specs=pl.BlockSpec((bb, H, W * Cout), lambda b: (b, 0, 0)),
    )

    out_row = pl.pallas_call(
        kernel,
        out_shape=jax.ShapeDtypeStruct((B, H, W * Cout), jnp.float32),
        grid_spec=grid_spec,
        compiler_params=pltpu.CompilerParams(
            dimension_semantics=("parallel",),          # batch blocks independent -> megacore
            vmem_limit_bytes=32 * 1024 * 1024,          # explicit raise (v5e default 16 MiB)
        ),
    )(x_row, w1b, b1, w2cat, b2, w3b, b3)

    # Back to the PyTorch NCHW output convention.
    return jnp.transpose(out_row.reshape(B, H, W, Cout), (0, 3, 1, 2))


# --------------------------------------------------------------------------------------
# Plain-JAX reference (true f32 semantics of the PyTorch module, NCHW)
# --------------------------------------------------------------------------------------
def ref_bottleneck(x, c1, c2, c3, bn1, bn2, bn3, eps=1e-5):
    def bn(t, p):
        g, b, m, v = p
        s = g / jnp.sqrt(v + eps)
        return t * s[None, :, None, None] + (b - m * s)[None, :, None, None]

    dn = ('NCHW', 'OIHW', 'NCHW')
    y = lax.conv_general_dilated(x, c1, (1, 1), 'VALID', dimension_numbers=dn)
    y = jnp.maximum(bn(y, bn1), 0.0)
    z = lax.conv_general_dilated(y, c2, (1, 1), ((1, 1), (1, 1)), dimension_numbers=dn)
    z = jnp.maximum(bn(z, bn2), 0.0)
    o = lax.conv_general_dilated(z, c3, (1, 1), 'VALID', dimension_numbers=dn)
    o = bn(o, bn3)
    return jnp.maximum(o + x, 0.0)


# --------------------------------------------------------------------------------------
# Demo / correctness check
# --------------------------------------------------------------------------------------
if __name__ == "__main__":
    B, H, W = 2, 16, 16
    planes = 4
    inplanes = planes * 4   # 16 -> identity residual is shape-compatible (downsample=None)

    key = jax.random.PRNGKey(0)
    ks = jax.random.split(key, 8)

    x_nchw = jax.random.normal(ks[0], (B, inplanes, H, W), dtype=jnp.float32)
    conv1_w = (jax.random.normal(ks[1], (planes, inplanes, 1, 1)) * 0.1).astype(jnp.float32)
    conv2_w = (jax.random.normal(ks[2], (planes, planes, 3, 3)) * 0.1).astype(jnp.float32)
    conv3_w = (jax.random.normal(ks[3], (4 * planes, planes, 1, 1)) * 0.1).astype(jnp.float32)

    def make_bn(k, c):
        k1, k2, k3, k4 = jax.random.split(k, 4)
        gamma = jax.random.uniform(k1, (c,), minval=0.5, maxval=1.5)
        beta = jax.random.normal(k2, (c,)) * 0.1
        mean = jax.random.normal(k3, (c,)) * 0.1
        var = jax.random.uniform(k4, (c,), minval=0.5, maxval=1.5)
        return (gamma.astype(jnp.float32), beta.astype(jnp.float32),
                mean.astype(jnp.float32), var.astype(jnp.float32))

    bn1 = make_bn(ks[4], planes)
    bn2 = make_bn(ks[5], planes)
    bn3 = make_bn(ks[6], 4 * planes)

    out = bottleneck_pallas(x_nchw, conv1_w, conv2_w, conv3_w, bn1, bn2, bn3)
    out = jax.block_until_ready(out)

    ref = ref_bottleneck(x_nchw, conv1_w, conv2_w, conv3_w, bn1, bn2, bn3)
    assert out.shape == (B, 4 * planes, H, W)
    max_err = float(jnp.max(jnp.abs(out - ref)))
    # bf16 MXU operands (f32 accumulation) vs. an all-f32 reference -> loosened tolerance.
    assert jnp.allclose(out, ref, atol=5e-2, rtol=5e-2), max_err

    print("KERNEL_OK")
</pallas_src>

<mosaic_0001>
module attributes {stable_mosaic.version = 11 : i64} {
  func.func @kernel(%arg0: i32, %arg1: memref<2x16x256xf32, #tpu.memory_space<vmem>>, %arg2: memref<256x64xbf16, #tpu.memory_space<vmem>>, %arg3: memref<1x64xf32, #tpu.memory_space<vmem>>, %arg4: memref<192x64xbf16, #tpu.memory_space<vmem>>, %arg5: memref<1x64xf32, #tpu.memory_space<vmem>>, %arg6: memref<64x256xbf16, #tpu.memory_space<vmem>>, %arg7: memref<1x256xf32, #tpu.memory_space<vmem>>, %arg8: memref<2x16x256xf32, #tpu.memory_space<vmem>>) attributes {dimension_semantics = [#tpu.dimension_semantics<parallel>], iteration_bounds = array<i64: 1>, scalar_prefetch = 0 : i64, scratch_operands = 0 : i64, tpu.core_type = #tpu.core_type<tc>, window_params = [{transform_indices = @transform_0, window_bounds = array<i64: 2, 16, 256>}, {pipeline_mode = #tpu.pipeline_mode<synchronous>, transform_indices = @transform_1, window_bounds = array<i64: 256, 64>}, {pipeline_mode = #tpu.pipeline_mode<synchronous>, transform_indices = @transform_2, window_bounds = array<i64: 1, 64>}, {pipeline_mode = #tpu.pipeline_mode<synchronous>, transform_indices = @transform_3, window_bounds = array<i64: 192, 64>}, {pipeline_mode = #tpu.pipeline_mode<synchronous>, transform_indices = @transform_4, window_bounds = array<i64: 1, 64>}, {pipeline_mode = #tpu.pipeline_mode<synchronous>, transform_indices = @transform_5, window_bounds = array<i64: 64, 256>}, {pipeline_mode = #tpu.pipeline_mode<synchronous>, transform_indices = @transform_6, window_bounds = array<i64: 1, 256>}, {transform_indices = @transform_7, window_bounds = array<i64: 2, 16, 256>}]} {
    %c0 = arith.constant 0 : index
    %c0_0 = arith.constant 0 : index
    %c0_1 = arith.constant 0 : index
    %0 = vector.load %arg1[%c0, %c0_0, %c0_1] : memref<2x16x256xf32, #tpu.memory_space<vmem>>, vector<2x16x256xf32>
    %1 = vector.shape_cast %0 : vector<2x16x256xf32> to vector<32x256xf32>
    %2 = arith.truncf %1 : vector<32x256xf32> to vector<32x256xbf16>
    %c0_2 = arith.constant 0 : index
    %c0_3 = arith.constant 0 : index
    %3 = vector.load %arg2[%c0_2, %c0_3] : memref<256x64xbf16, #tpu.memory_space<vmem>>, vector<256x64xbf16>
    %cst = arith.constant dense<0.000000e+00> : vector<32x64xf32>
    %4 = tpu.matmul %2, %3, %cst {dimension_numbers = #tpu.dot_dimension_numbers<[1], [0], [0], [1], [0, 0, 1, 1], [], []>} : vector<32x256xbf16>, vector<256x64xbf16>, vector<32x64xf32> -> vector<32x64xf32>
    %c0_4 = arith.constant 0 : index
    %c0_5 = arith.constant 0 : index
    %5 = vector.load %arg3[%c0_4, %c0_5] : memref<1x64xf32, #tpu.memory_space<vmem>>, vector<1x64xf32>
    %6 = vector.broadcast %5 : vector<1x64xf32> to vector<32x64xf32>
    %7 = arith.addf %4, %6 : vector<32x64xf32>
    %cst_6 = arith.constant 0.000000e+00 : f32
    %8 = vector.broadcast %cst_6 : f32 to vector<32x64xf32>
    %9 = arith.maximumf %7, %8 : vector<32x64xf32>
    %10 = tpu.iota {dimensions = array<i32: 0>} : vector<32x1xi32>
    %c16_i32 = arith.constant 16 : i32
    %c0_i32 = arith.constant 0 : i32
    %11 = arith.cmpi eq, %c16_i32, %c0_i32 : i32
    %c1_i32 = arith.constant 1 : i32
    %12 = arith.select %11, %c1_i32, %c16_i32 : i32
    %13 = vector.broadcast %12 : i32 to vector<32x1xi32>
    %14 = arith.remsi %10, %13 : vector<32x1xi32>
    %c0_i32_7 = arith.constant 0 : i32
    %15 = vector.broadcast %c0_i32_7 : i32 to vector<32x1xi32>
    %16 = arith.cmpi ne, %14, %15 : vector<32x1xi32>
    %c0_i32_8 = arith.constant 0 : i32
    %17 = vector.broadcast %c0_i32_8 : i32 to vector<32x1xi32>
    %18 = arith.cmpi slt, %14, %17 : vector<32x1xi32>
    %c0_i32_9 = arith.constant 0 : i32
    %19 = arith.cmpi slt, %12, %c0_i32_9 : i32
    %20 = vector.broadcast %19 : i1 to vector<32x1xi1>
    %21 = vector.broadcast %20 : vector<32x1xi1> to vector<32x1xi1>
    %22 = arith.xori %18, %21 : vector<32x1xi1>
    %23 = arith.andi %22, %16 : vector<32x1xi1>
    %24 = vector.broadcast %12 : i32 to vector<32x1xi32>
    %25 = arith.addi %14, %24 : vector<32x1xi32>
    %26 = arith.select %23, %25, %14 : vector<32x1xi1>, vector<32x1xi32>
    %c0_i32_10 = arith.constant 0 : i32
    %27 = vector.broadcast %c0_i32_10 : i32 to vector<32x1xi32>
    %28 = arith.cmpi eq, %26, %27 : vector<32x1xi32>
    %c1_i32_11 = arith.constant 1 : i32
    %29 = tpu.dynamic_rotate %9 by %c1_i32_11 dim 0 : vector<32x64xf32>, i32 -> vector<32x64xf32>
    %cst_12 = arith.constant 0.000000e+00 : f32
    %30 = vector.shape_cast %28 : vector<32x1xi1> to vector<32x1xi1>
    %31 = vector.broadcast %30 : vector<32x1xi1> to vector<32x64xi1>
    %32 = vector.broadcast %cst_12 : f32 to vector<32x64xf32>
    %33 = arith.select %31, %32, %29 : vector<32x64xi1>, vector<32x64xf32>
    %c15_i32 = arith.constant 15 : i32
    %34 = vector.broadcast %c15_i32 : i32 to vector<32x1xi32>
    %35 = arith.cmpi eq, %26, %34 : vector<32x1xi32>
    %c31_i32 = arith.constant 31 : i32
    %36 = tpu.dynamic_rotate %9 by %c31_i32 dim 0 : vector<32x64xf32>, i32 -> vector<32x64xf32>
    %cst_13 = arith.constant 0.000000e+00 : f32
    %37 = vector.shape_cast %35 : vector<32x1xi1> to vector<32x1xi1>
    %38 = vector.broadcast %37 : vector<32x1xi1> to vector<32x64xi1>
    %39 = vector.broadcast %cst_13 : f32 to vector<32x64xf32>
    %40 = arith.select %38, %39, %36 : vector<32x64xi1>, vector<32x64xf32>
    %41 = tpu.concatenate %33, %9, %40 in 1 : vector<32x64xf32>, vector<32x64xf32>, vector<32x64xf32> -> vector<32x192xf32>
    %42 = arith.truncf %41 : vector<32x192xf32> to vector<32x192xbf16>
    %c0_14 = arith.constant 0 : index
    %c0_15 = arith.constant 0 : index
    %43 = vector.load %arg4[%c0_14, %c0_15] : memref<192x64xbf16, #tpu.memory_space<vmem>>, vector<192x64xbf16>
    %cst_16 = arith.constant dense<0.000000e+00> : vector<32x64xf32>
    %44 = tpu.matmul %42, %43, %cst_16 {dimension_numbers = #tpu.dot_dimension_numbers<[1], [0], [0], [1], [0, 0, 1, 1], [], []>} : vector<32x192xbf16>, vector<192x64xbf16>, vector<32x64xf32> -> vector<32x64xf32>
    %c0_17 = arith.constant 0 : index
    %c0_18 = arith.constant 0 : index
    %45 = vector.load %arg5[%c0_17, %c0_18] : memref<1x64xf32, #tpu.memory_space<vmem>>, vector<1x64xf32>
    %46 = vector.broadcast %45 : vector<1x64xf32> to vector<32x64xf32>
    %47 = arith.addf %44, %46 : vector<32x64xf32>
    %cst_19 = arith.constant 0.000000e+00 : f32
    %48 = vector.broadcast %cst_19 : f32 to vector<32x64xf32>
    %49 = arith.maximumf %47, %48 : vector<32x64xf32>
    %50 = arith.truncf %49 : vector<32x64xf32> to vector<32x64xbf16>
    %c0_20 = arith.constant 0 : index
    %c0_21 = arith.constant 0 : index
    %51 = vector.load %arg6[%c0_20, %c0_21] : memref<64x256xbf16, #tpu.memory_space<vmem>>, vector<64x256xbf16>
    %cst_22 = arith.constant dense<0.000000e+00> : vector<32x256xf32>
    %52 = tpu.matmul %50, %51, %cst_22 {dimension_numbers = #tpu.dot_dimension_numbers<[1], [0], [0], [1], [0, 0, 1, 1], [], []>} : vector<32x64xbf16>, vector<64x256xbf16>, vector<32x256xf32> -> vector<32x256xf32>
    %c0_23 = arith.constant 0 : index
    %c0_24 = arith.constant 0 : index
    %53 = vector.load %arg7[%c0_23, %c0_24] : memref<1x256xf32, #tpu.memory_space<vmem>>, vector<1x256xf32>
    %54 = vector.broadcast %53 : vector<1x256xf32> to vector<32x256xf32>
    %55 = arith.addf %52, %54 : vector<32x256xf32>
    %56 = arith.addf %55, %1 : vector<32x256xf32>
    %cst_25 = arith.constant 0.000000e+00 : f32
    %57 = vector.broadcast %cst_25 : f32 to vector<32x256xf32>
    %58 = arith.maximumf %56, %57 : vector<32x256xf32>
    %59 = vector.shape_cast %58 : vector<32x256xf32> to vector<2x16x256xf32>
    %c0_26 = arith.constant 0 : index
    %c0_27 = arith.constant 0 : index
    %c0_28 = arith.constant 0 : index
    %60 = vector.load %arg8[%c0_26, %c0_27, %c0_28] : memref<2x16x256xf32, #tpu.memory_space<vmem>>, vector<2x16x256xf32>
    tpu.vector_store %arg8[%c0_26, %c0_27, %c0_28], %59 {strides = array<i32>} : memref<2x16x256xf32, #tpu.memory_space<vmem>>, vector<2x16x256xf32>,
    return
  }
  func.func @transform_0(%arg0: i32) -> (i32, i32, i32) {
    %c0_i32 = arith.constant 0 : i32
    %c0_i32_0 = arith.constant 0 : i32
    %c0_i32_1 = arith.constant 0 : i32
    return %arg0, %c0_i32, %c0_i32_0 : i32, i32, i32
  }
  func.func @transform_1(%arg0: i32) -> (i32, i32) {
    %c0_i32 = arith.constant 0 : i32
    %c0_i32_0 = arith.constant 0 : i32
    %c0_i32_1 = arith.constant 0 : i32
    return %c0_i32, %c0_i32_0 : i32, i32
  }
  func.func @transform_2(%arg0: i32) -> (i32, i32) {
    %c0_i32 = arith.constant 0 : i32
    %c0_i32_0 = arith.constant 0 : i32
    %c0_i32_1 = arith.constant 0 : i32
    return %c0_i32, %c0_i32_0 : i32, i32
  }
  func.func @transform_3(%arg0: i32) -> (i32, i32) {
    %c0_i32 = arith.constant 0 : i32
    %c0_i32_0 = arith.constant 0 : i32
    %c0_i32_1 = arith.constant 0 : i32
    return %c0_i32, %c0_i32_0 : i32, i32
  }
  func.func @transform_4(%arg0: i32) -> (i32, i32) {
    %c0_i32 = arith.constant 0 : i32
    %c0_i32_0 = arith.constant 0 : i32
    %c0_i32_1 = arith.constant 0 : i32
    return %c0_i32, %c0_i32_0 : i32, i32
  }
  func.func @transform_5(%arg0: i32) -> (i32, i32) {
    %c0_i32 = arith.constant 0 : i32
    %c0_i32_0 = arith.constant 0 : i32
    %c0_i32_1 = arith.constant 0 : i32
    return %c0_i32, %c0_i32_0 : i32, i32
  }
  func.func @transform_6(%arg0: i32) -> (i32, i32) {
    %c0_i32 = arith.constant 0 : i32
    %c0_i32_0 = arith.constant 0 : i32
    %c0_i32_1 = arith.constant 0 : i32
    return %c0_i32, %c0_i32_0 : i32, i32
  }
  func.func @transform_7(%arg0: i32) -> (i32, i32, i32) {
    %c0_i32 = arith.constant 0 : i32
    %c0_i32_0 = arith.constant 0 : i32
    %c0_i32_1 = arith.constant 0 : i32
    return %arg0, %c0_i32, %c0_i32_0 : i32, i32, i32
  }
}

</mosaic_0001>

<llo_original>
// kernel: tpu_custom_call.1
$region0: #{tpu_custom_call.1}
  #allocation0 [shape = 'u32[]', space=smem, size = 0x4, offset = 0x4, fixed_abs, tag = 'smem constant byte address 0x4 - core index']
  #allocation1 [shape = 'u32[144,128]{1,0:T(1,128)}', space=vmem, size = 0x12000, scoped, tag = 'internal scratch']
  %s0 = inlined_call_operand.vmem [shape: f32[2,16,256], index: 0, kind: input, shape index: {}]
  %s1 = inlined_call_operand.vmem [shape: bf16[256,64], index: 1, kind: input, shape index: {}]
  %s2 = inlined_call_operand.vmem [shape: f32[1,64], index: 2, kind: input, shape index: {}]
  %s3 = inlined_call_operand.vmem [shape: bf16[192,64], index: 3, kind: input, shape index: {}]
  %s4 = inlined_call_operand.vmem [shape: f32[1,64], index: 4, kind: input, shape index: {}]
  %s5 = inlined_call_operand.vmem [shape: bf16[64,256], index: 5, kind: input, shape index: {}]
  %s6 = inlined_call_operand.vmem [shape: f32[1,256], index: 6, kind: input, shape index: {}]
  %s7 = inlined_call_operand.hbm [shape: f32[2,16,256], index: 7, kind: output, shape index: {}]
  %s8 = sld [smem:[#allocation0]]
  $region38: #{tpu_custom_call.1} parent=0
    _
  %s10 = ssub.s32 1, %s8
  %s11 = scalar_select 0, %s10, %s8
  $region1: #{tpu_custom_call.1} parent=0
    #allocation2 [shape = 'u8[32768]{0}', space=vmem, size = 0x8000, scoped, tag = 'output window, operand 0, single buffered']
    #allocation3 [shape = 's32[1]{0}', space=sflag, size = 0x4, scoped, tag = 'scoped memory for tpu_custom_call.1']
    %12 = vsyncpa [#allocation3], 0
    // Predicated region
    $region2: #{tpu_custom_call.1} parent=1 // pred_check
      _
    $region3: #{tpu_custom_call.1} parent=1 // pred_check_branch
      %14 = sbr.rel (0) target = $region5
    $region4: #{tpu_custom_call.1} parent=1 // pred_region
      _
    $region5: #{tpu_custom_call.1} parent=1 // pred_fallthru
      _
    // Predicated region
    $region6: #{tpu_custom_call.1} parent=1 // pred_check
      _
    $region7: #{tpu_custom_call.1} parent=1 // pred_check_branch
      %16 = sbr.rel (0) target = $region9
    $region8: #{tpu_custom_call.1} parent=1 // pred_region
      _
    $region9: #{tpu_custom_call.1} parent=1 // pred_fallthru
      _
    // Predicated region
    $region10: #{tpu_custom_call.1} parent=1 // pred_check
      _
    $region11: #{tpu_custom_call.1} parent=1 // pred_check_branch
      %18 = sbr.rel (0) target = $region13
    $region12: #{tpu_custom_call.1} parent=1 // pred_region
      _
    $region13: #{tpu_custom_call.1} parent=1 // pred_fallthru
      _
    // Predicated region
    $region14: #{tpu_custom_call.1} parent=1 // pred_check
      _
    $region15: #{tpu_custom_call.1} parent=1 // pred_check_branch
      %20 = sbr.rel (0) target = $region17
    $region16: #{tpu_custom_call.1} parent=1 // pred_region
      _
    $region17: #{tpu_custom_call.1} parent=1 // pred_fallthru
      _
    // Predicated region
    $region18: #{tpu_custom_call.1} parent=1 // pred_check
      _
    $region19: #{tpu_custom_call.1} parent=1 // pred_check_branch
      %22 = sbr.rel (0) target = $region21
    $region20: #{tpu_custom_call.1} parent=1 // pred_region
      _
    $region21: #{tpu_custom_call.1} parent=1 // pred_fallthru
      _
    // Predicated region
    $region22: #{tpu_custom_call.1} parent=1 // pred_check
      _
    $region23: #{tpu_custom_call.1} parent=1 // pred_check_branch
      %24 = sbr.rel (0) target = $region25
    $region24: #{tpu_custom_call.1} parent=1 // pred_region
      _
    $region25: #{tpu_custom_call.1} parent=1 // pred_fallthru
      _
    // Predicated region
    $region26: #{tpu_custom_call.1} parent=1 // pred_check
      _
    $region27: #{tpu_custom_call.1} parent=1 // pred_check_branch
      %26 = sbr.rel (0) target = $region29
    $region28: #{tpu_custom_call.1} parent=1 // pred_region
      _
    $region29: #{tpu_custom_call.1} parent=1 // pred_fallthru
      _
    %v28 = vld [vmem:[%s0] sm:$0xff]
    %v29 = vld [vmem:[%s0 + $0x8] sm:$0xff]
    %v30 = vld [vmem:[%s0 + $0x10] sm:$0xff]
    %v31 = vld [vmem:[%s0 + $0x18] sm:$0xff]
    %v32 = vld [vmem:[%s0 + $0x20] sm:$0xff]
    %v33 = vld [vmem:[%s0 + $0x28] sm:$0xff]
    %v34 = vld [vmem:[%s0 + $0x30] sm:$0xff]
    %v35 = vld [vmem:[%s0 + $0x38] sm:$0xff]
    %v36 = vpack.c.bf16 %v30, %v28
    %v37 = vpack.c.bf16 %v31, %v29
    %v38 = vpack.c.bf16 %v34, %v32
    %v39 = vpack.c.bf16 %v35, %v33
    %v40 = vld [vmem:[%s1] sm:$0xf]
    %v41 = vld [vmem:[%s1 + $0x4] sm:$0xf]
    %v42 = vld [vmem:[%s1 + $0x8] sm:$0xf]
    %v43 = vld [vmem:[%s1 + $0xc] sm:$0xf]
    %v44 = vld [vmem:[%s1 + $0x10] sm:$0xf]
    %v45 = vld [vmem:[%s1 + $0x14] sm:$0xf]
    %v46 = vld [vmem:[%s1 + $0x18] sm:$0xf]
    %v47 = vld [vmem:[%s1 + $0x1c] sm:$0xf]
    %v48 = vld [vmem:[%s1 + $0x20] sm:$0xf]
    %v49 = vld [vmem:[%s1 + $0x24] sm:$0xf]
    %v50 = vld [vmem:[%s1 + $0x28] sm:$0xf]
    %v51 = vld [vmem:[%s1 + $0x2c] sm:$0xf]
    %v52 = vld [vmem:[%s1 + $0x30] sm:$0xf]
    %v53 = vld [vmem:[%s1 + $0x34] sm:$0xf]
    %v54 = vld [vmem:[%s1 + $0x38] sm:$0xf]
    %v55 = vld [vmem:[%s1 + $0x3c] sm:$0xf]
    %v56 = vld [vmem:[%s1 + $0x40] sm:$0xf]
    %v57 = vld [vmem:[%s1 + $0x44] sm:$0xf]
    %v58 = vld [vmem:[%s1 + $0x48] sm:$0xf]
    %v59 = vld [vmem:[%s1 + $0x4c] sm:$0xf]
    %v60 = vld [vmem:[%s1 + $0x50] sm:$0xf]
    %v61 = vld [vmem:[%s1 + $0x54] sm:$0xf]
    %v62 = vld [vmem:[%s1 + $0x58] sm:$0xf]
    %v63 = vld [vmem:[%s1 + $0x5c] sm:$0xf]
    %v64 = vld [vmem:[%s1 + $0x60] sm:$0xf]
    %v65 = vld [vmem:[%s1 + $0x64] sm:$0xf]
    %v66 = vld [vmem:[%s1 + $0x68] sm:$0xf]
    %v67 = vld [vmem:[%s1 + $0x6c] sm:$0xf]
    %v68 = vld [vmem:[%s1 + $0x70] sm:$0xf]
    %v69 = vld [vmem:[%s1 + $0x74] sm:$0xf]
    %v70 = vld [vmem:[%s1 + $0x78] sm:$0xf]
    %v71 = vld [vmem:[%s1 + $0x7c] sm:$0xf]
    %v72 = vld [vmem:[%s2] sm:$0x1]
    %v74 = vlaneseq
    %v75 = vshrl.u32 %v74, 7
    %v76 = vsub.s32 0, %v75
    %v77 = vrot.slane %v72, %v76
    %v111 = vunpack.c.l.b16 %v40
    %v112 = vunpack.c.l.b16 %v41
    %v113 = vunpack.c.l.b16 %v42
    %v114 = vunpack.c.l.b16 %v43
    %v115 = vunpack.c.l.b16 %v44
    %v116 = vunpack.c.l.b16 %v45
    %v117 = vunpack.c.l.b16 %v46
    %v118 = vunpack.c.l.b16 %v47
    %v119 = vunpack.c.l.b16 %v48
    %v120 = vunpack.c.l.b16 %v49
    %v121 = vunpack.c.l.b16 %v50
    %v122 = vunpack.c.l.b16 %v51
    %v123 = vunpack.c.l.b16 %v52
    %v124 = vunpack.c.l.b16 %v53
    %v125 = vunpack.c.l.b16 %v54
    %v126 = vunpack.c.l.b16 %v55
    %v127 = vunpack.c.l.b16 %v56
    %v128 = vunpack.c.l.b16 %v57
    %v129 = vunpack.c.l.b16 %v58
    %v130 = vunpack.c.l.b16 %v59
    %v131 = vunpack.c.l.b16 %v60
    %v132 = vunpack.c.l.b16 %v61
    %v133 = vunpack.c.l.b16 %v62
    %v134 = vunpack.c.l.b16 %v63
    %v135 = vunpack.c.l.b16 %v64
    %v136 = vunpack.c.l.b16 %v65
    %v137 = vunpack.c.l.b16 %v66
    %v138 = vunpack.c.l.b16 %v67
    %v139 = vunpack.c.l.b16 %v68
    %v140 = vunpack.c.l.b16 %v69
    %v141 = vunpack.c.l.b16 %v70
    %v142 = vunpack.c.l.b16 %v71
    %v143 = vpack.c.b16 %v112, %v111
    %v144 = vpack.c.b16 %v114, %v113
    %v145 = vpack.c.b16 %v116, %v115
    %v146 = vpack.c.b16 %v118, %v117
    %v147 = vpack.c.b16 %v120, %v119
    %v148 = vpack.c.b16 %v122, %v121
    %v149 = vpack.c.b16 %v124, %v123
    %v150 = vpack.c.b16 %v126, %v125
    %v151 = vpack.c.b16 %v128, %v127
    %v152 = vpack.c.b16 %v130, %v129
    %v153 = vpack.c.b16 %v132, %v131
    %v154 = vpack.c.b16 %v134, %v133
    %v155 = vpack.c.b16 %v136, %v135
    %v156 = vpack.c.b16 %v138, %v137
    %v157 = vpack.c.b16 %v140, %v139
    %v158 = vpack.c.b16 %v142, %v141
    %175 = vmatprep.subr.bf16.mxu0 0
    %176 = vmatpush1.bf16.msra.mxu0 %v143
    %177 = vmatprep.subr.bf16.mxu0 0
    %178 = vmatpush1.bf16.msra.mxu0 %v144
    %179 = vmatprep.subr.bf16.mxu0 0
    %180 = vmatpush1.bf16.msra.mxu0 %v145
    %181 = vmatprep.subr.bf16.mxu0 0
    %182 = vmatpush1.bf16.msra.mxu0 %v146
    %183 = vmatprep.subr.bf16.mxu0 0
    %184 = vmatpush1.bf16.msra.mxu0 %v147
    %185 = vmatprep.subr.bf16.mxu0 0
    %186 = vmatpush1.bf16.msra.mxu0 %v148
    %187 = vmatprep.subr.bf16.mxu0 0
    %188 = vmatpush1.bf16.msra.mxu0 %v149
    %189 = vmatprep.subr.bf16.mxu0 0
    %190 = vmatpush1.bf16.msra.mxu0 %v150
    %191 = vmatprep.subr.bf16.mxu0 0
    %192 = vmatpush1.bf16.msra.mxu0 %v151
    %193 = vmatprep.subr.bf16.mxu0 0
    %194 = vmatpush1.bf16.msra.mxu0 %v152
    %195 = vmatprep.subr.bf16.mxu0 0
    %196 = vmatpush1.bf16.msra.mxu0 %v153
    %197 = vmatprep.subr.bf16.mxu0 0
    %198 = vmatpush1.bf16.msra.mxu0 %v154
    %199 = vmatprep.subr.bf16.mxu0 0
    %200 = vmatpush1.bf16.msra.mxu0 %v155
    %201 = vmatprep.subr.bf16.mxu0 0
    %202 = vmatpush1.bf16.msra.mxu0 %v156
    %203 = vmatprep.subr.bf16.mxu0 0
    %204 = vmatpush1.bf16.msra.mxu0 %v157
    %205 = vmatprep.subr.bf16.mxu0 0
    %206 = vmatpush1.bf16.msra.mxu0 %v158
    %207 = vmatprep.mubr.bf16.mxu0 %v37
    %208 = vmatmul.mubr.bf16.gmra.mrb[0].mxu0 %v36
    %v209 = vpop.f32.mrb[0].mxu0
    %v210 = vadd.f32 %v77, %v209
    %v211 = vpop.f32.mrb[0].mxu0
    %v212 = vpop.f32.mrb[0].mxu0
    %v213 = vadd.f32 %v77, %v212
    %v214 = vpop.f32.mrb[0].mxu0
    %215 = vmatprep.mubr.bf16.mxu0 %v39
    %216 = vmatmul.mubr.bf16.gmra.mrb[0].mxu0 %v38
    %v217 = vpop.f32.mrb[0].mxu0
    %v218 = vadd.f32 %v77, %v217
    %v219 = vpop.f32.mrb[0].mxu0
    %v220 = vpop.f32.mrb[0].mxu0
    %v221 = vadd.f32 %v77, %v220
    %v222 = vpop.f32.mrb[0].mxu0
    %223 = vdwg.mxu0
    %v224 = vmax.f32 %v210, 0.0
    %v225 = vmax.f32 %v213, 0.0
    %v226 = vmax.f32 %v218, 0.0
    %v227 = vmax.f32 %v221, 0.0
    %v228 = vlaneseq
    %v229 = vshrl.u32 %v228, 7
    %v230 = vadd.s32 %v229, 8
    %v231 = vadd.s32 %v229, 16
    %v232 = vadd.s32 %v229, 24
    %vm233 = vcmp.lt.s32.totalorder %v229, 0
    %v234 = vsub.s32 0, %v229
    %v235 = vsel %vm233, %v234, %v229
    %v236 = vshrl.u32 %v235, 4
    %v237 = vand.u32 %v235, 15
    %v238 = vsub.s32 0, %v237
    %v239 = vsel %vm233, %v238, %v237
    %vm240 = vcmp.lt.s32.totalorder %v230, 0
    %v241 = vsub.s32 0, %v230
    %v242 = vsel %vm240, %v241, %v230
    %v243 = vshrl.u32 %v242, 4
    %v244 = vand.u32 %v242, 15
    %v245 = vsub.s32 0, %v244
    %v246 = vsel %vm240, %v245, %v244
    %vm247 = vcmp.lt.s32.totalorder %v231, 0
    %v248 = vsub.s32 0, %v231
    %v249 = vsel %vm247, %v248, %v231
    %v250 = vshrl.u32 %v249, 4
    %v251 = vand.u32 %v249, 15
    %v252 = vsub.s32 0, %v251
    %v253 = vsel %vm247, %v252, %v251
    %vm254 = vcmp.lt.s32.totalorder %v232, 0
    %v255 = vsub.s32 0, %v232
    %v256 = vsel %vm254, %v255, %v232
    %v257 = vshrl.u32 %v256, 4
    %v258 = vand.u32 %v256, 15
    %v259 = vsub.s32 0, %v258
    %v260 = vsel %vm254, %v259, %v258
    %vm261 = vcmp.ne.s32.totalorder %v239, 0
    %vm262 = vcmp.ne.s32.totalorder %v246, 0
    %vm263 = vcmp.ne.s32.totalorder %v253, 0
    %vm264 = vcmp.ne.s32.totalorder %v260, 0
    %vm265 = vcmp.lt.s32.totalorder %v239, 0
    %vm266 = vcmp.lt.s32.totalorder %v246, 0
    %vm267 = vcmp.lt.s32.totalorder %v253, 0
    %vm268 = vcmp.lt.s32.totalorder %v260, 0
    %vm269 = vmand %vm265, %vm261
    %vm270 = vmand %vm266, %vm262
    %vm271 = vmand %vm267, %vm263
    %vm272 = vmand %vm268, %vm264
    %v273 = vadd.s32 %v239, 16
    %v274 = vadd.s32 %v246, 16
    %v275 = vadd.s32 %v253, 16
    %v276 = vadd.s32 %v260, 16
    %v277 = vsel %vm269, %v273, %v239
    %v278 = vsel %vm270, %v274, %v246
    %v279 = vsel %vm271, %v275, %v253
    %v280 = vsel %vm272, %v276, %v260
    %vm281 = vcmp.eq.s32.totalorder %v277, 0
    %vm282 = vcmp.eq.s32.totalorder %v278, 0
    %vm283 = vcmp.eq.s32.totalorder %v279, 0
    %vm284 = vcmp.eq.s32.totalorder %v280, 0
    %v285 = vrot.slane %v224, 7
    %v286 = vrot.slane %v225, 7
    %v287 = vrot.slane %v226, 7
    %v288 = vrot.slane %v227, 7
    %vm289 = vcmp.lt.s32.totalorder %v229, 1
    %v290 = vsel %vm289, %v287, %v288
    %v291 = vsel %vm289, %v286, %v287
    %v292 = vsel %vm289, %v285, %v286
    %v293 = vsel %vm289, %v288, %v285
    %v294 = vsel %vm281, 1, 0
    %v295 = vsel %vm282, 1, 0
    %v296 = vsel %vm283, 1, 0
    %v297 = vsel %vm284, 1, 0
    %vm298 = vcmp.eq.s32.totalorder %v294, 1
    %vm299 = vcmp.eq.s32.totalorder %v295, 1
    %vm300 = vcmp.eq.s32.totalorder %v296, 1
    %vm301 = vcmp.eq.s32.totalorder %v297, 1
    %v302 = vsel %vm298, 0.0, %v293
    %v303 = vsel %vm299, 0.0, %v292
    %v304 = vsel %vm300, 0.0, %v291
    %v305 = vsel %vm301, 0.0, %v290
    %vm306 = vcmp.eq.s32.totalorder %v277, 15
    %vm307 = vcmp.eq.s32.totalorder %v278, 15
    %vm308 = vcmp.eq.s32.totalorder %v279, 15
    %vm309 = vcmp.eq.s32.totalorder %v280, 15
    %v310 = vrot.slane %v224, 1
    %v311 = vrot.slane %v225, 1
    %v312 = vrot.slane %v226, 1
    %v313 = vrot.slane %v227, 1
    %vm314 = vcmp.lt.s32.totalorder %v229, 7
    %v315 = vsel %vm314, %v312, %v313
    %v316 = vsel %vm314, %v311, %v312
    %v317 = vsel %vm314, %v310, %v311
    %v318 = vsel %vm314, %v313, %v310
    %v319 = vsel %vm306, 1, 0
    %v320 = vsel %vm307, 1, 0
    %v321 = vsel %vm308, 1, 0
    %v322 = vsel %vm309, 1, 0
    %vm323 = vcmp.eq.s32.totalorder %v319, 1
    %vm324 = vcmp.eq.s32.totalorder %v320, 1
    %vm325 = vcmp.eq.s32.totalorder %v321, 1
    %vm326 = vcmp.eq.s32.totalorder %v322, 1
    %v327 = vsel %vm323, 0.0, %v317
    %v328 = vsel %vm324, 0.0, %v316
    %v329 = vsel %vm325, 0.0, %v315
    %v330 = vsel %vm326, 0.0, %v318
    %335 = vrot.lane.b32.xlu0 %v224, 64
    %v336 = vpop.permute.xlu0 %335
    %337 = vrot.lane.b32.xlu0 %v225, 64
    %v338 = vpop.permute.xlu0 %337
    %339 = vrot.lane.b32.xlu0 %v226, 64
    %v340 = vpop.permute.xlu0 %339
    %341 = vrot.lane.b32.xlu0 %v227, 64
    %v342 = vpop.permute.xlu0 %341
    %vm347 = vcmask 523264
    %v348 = vsel %vm347, %v302, %v336
    %v349 = vsel %vm347, %v303, %v338
    %v350 = vsel %vm347, %v304, %v340
    %v351 = vsel %vm347, %v305, %v342
    %v352 = vpack.c.bf16 %v349, %v348
    %v353 = vpack.c.bf16 %v328, %v327
    %v354 = vpack.c.bf16 %v351, %v350
    %v355 = vpack.c.bf16 %v330, %v329
    %v356 = vld [vmem:[%s3] sm:$0xf]
    %v357 = vld [vmem:[%s3 + $0x4] sm:$0xf]
    %v358 = vld [vmem:[%s3 + $0x8] sm:$0xf]
    %v359 = vld [vmem:[%s3 + $0xc] sm:$0xf]
    %v360 = vld [vmem:[%s3 + $0x10] sm:$0xf]
    %v361 = vld [vmem:[%s3 + $0x14] sm:$0xf]
    %v362 = vld [vmem:[%s3 + $0x18] sm:$0xf]
    %v363 = vld [vmem:[%s3 + $0x1c] sm:$0xf]
    %v364 = vld [vmem:[%s3 + $0x20] sm:$0xf]
    %v365 = vld [vmem:[%s3 + $0x24] sm:$0xf]
    %v366 = vld [vmem:[%s3 + $0x28] sm:$0xf]
    %v367 = vld [vmem:[%s3 + $0x2c] sm:$0xf]
    %v368 = vld [vmem:[%s3 + $0x30] sm:$0xf]
    %v369 = vld [vmem:[%s3 + $0x34] sm:$0xf]
    %v370 = vld [vmem:[%s3 + $0x38] sm:$0xf]
    %v371 = vld [vmem:[%s3 + $0x3c] sm:$0xf]
    %v372 = vld [vmem:[%s3 + $0x40] sm:$0xf]
    %v373 = vld [vmem:[%s3 + $0x44] sm:$0xf]
    %v374 = vld [vmem:[%s3 + $0x48] sm:$0xf]
    %v375 = vld [vmem:[%s3 + $0x4c] sm:$0xf]
    %v376 = vld [vmem:[%s3 + $0x50] sm:$0xf]
    %v377 = vld [vmem:[%s3 + $0x54] sm:$0xf]
    %v378 = vld [vmem:[%s3 + $0x58] sm:$0xf]
    %v379 = vld [vmem:[%s3 + $0x5c] sm:$0xf]
    %v380 = vld [vmem:[%s4] sm:$0x1]
    %v382 = vlaneseq
    %v383 = vshrl.u32 %v382, 7
    %v384 = vsub.s32 0, %v383
    %v385 = vrot.slane %v380, %v384
    %v411 = vunpack.c.l.b16 %v356
    %v412 = vunpack.c.l.b16 %v357
    %v413 = vunpack.c.l.b16 %v358
    %v414 = vunpack.c.l.b16 %v359
    %v415 = vunpack.c.l.b16 %v360
    %v416 = vunpack.c.l.b16 %v361
    %v417 = vunpack.c.l.b16 %v362
    %v418 = vunpack.c.l.b16 %v363
    %v419 = vunpack.c.l.b16 %v364
    %v420 = vunpack.c.l.b16 %v365
    %v421 = vunpack.c.l.b16 %v366
    %v422 = vunpack.c.l.b16 %v367
    %v423 = vunpack.c.l.b16 %v368
    %v424 = vunpack.c.l.b16 %v369
    %v425 = vunpack.c.l.b16 %v370
    %v426 = vunpack.c.l.b16 %v371
    %v427 = vunpack.c.l.b16 %v372
    %v428 = vunpack.c.l.b16 %v373
    %v429 = vunpack.c.l.b16 %v374
    %v430 = vunpack.c.l.b16 %v375
    %v431 = vunpack.c.l.b16 %v376
    %v432 = vunpack.c.l.b16 %v377
    %v433 = vunpack.c.l.b16 %v378
    %v434 = vunpack.c.l.b16 %v379
    %v435 = vpack.c.b16 %v412, %v411
    %v436 = vpack.c.b16 %v414, %v413
    %v437 = vpack.c.b16 %v416, %v415
    %v438 = vpack.c.b16 %v418, %v417
    %v439 = vpack.c.b16 %v420, %v419
    %v440 = vpack.c.b16 %v422, %v421
    %v441 = vpack.c.b16 %v424, %v423
    %v442 = vpack.c.b16 %v426, %v425
    %v443 = vpack.c.b16 %v428, %v427
    %v444 = vpack.c.b16 %v430, %v429
    %v445 = vpack.c.b16 %v432, %v431
    %v446 = vpack.c.b16 %v434, %v433
    %v460 = vsel %vm347, %v353, 0
    %v463 = vsel %vm347, %v355, 0
    %465 = vmatprep.subr.bf16.mxu0 0
    %466 = vmatpush1.bf16.msra.mxu0 %v435
    %467 = vmatprep.subr.bf16.mxu0 0
    %468 = vmatpush1.bf16.msra.mxu0 %v436
    %469 = vmatprep.subr.bf16.mxu0 0
    %470 = vmatpush1.bf16.msra.mxu0 %v437
    %471 = vmatprep.subr.bf16.mxu0 0
    %472 = vmatpush1.bf16.msra.mxu0 %v438
    %473 = vmatprep.subr.bf16.mxu0 0
    %474 = vmatpush1.bf16.msra.mxu0 %v439
    %475 = vmatprep.subr.bf16.mxu0 0
    %476 = vmatpush1.bf16.msra.mxu0 %v440
    %477 = vmatprep.subr.bf16.mxu0 0
    %478 = vmatpush1.bf16.msra.mxu0 %v441
    %479 = vmatprep.subr.bf16.mxu0 0
    %480 = vmatpush1.bf16.msra.mxu0 %v442
    %481 = vmatprep.subr.bf16.mxu0 0
    %482 = vmatpush1.bf16.msra.mxu0 %v443
    %483 = vmatprep.subr.bf16.mxu0 0
    %484 = vmatpush1.bf16.msra.mxu0 %v444
    %485 = vmatprep.subr.bf16.mxu0 0
    %486 = vmatpush1.bf16.msra.mxu0 %v445
    %487 = vmatprep.subr.bf16.mxu0 0
    %488 = vmatpush1.bf16.msra.mxu0 %v446
    %489 = vmatprep.subr.bf16.mxu0 0
    %490 = vmatpush1.bf16.msra.mxu0 0
    %491 = vmatprep.subr.bf16.mxu0 0
    %492 = vmatpush1.bf16.msra.mxu0 0
    %493 = vmatprep.subr.bf16.mxu0 0
    %494 = vmatpush1.bf16.msra.mxu0 0
    %495 = vmatprep.subr.bf16.mxu0 0
    %496 = vmatpush1.bf16.msra.mxu0 0
    %497 = vmatprep.mubr.bf16.mxu0 %v460
    %498 = vmatmul.mubr.bf16.gmra.mrb[0].mxu0 %v352
    %v499 = vpop.f32.mrb[0].mxu0
    %v500 = vadd.f32 %v385, %v499
    %v501 = vpop.f32.mrb[0].mxu0
    %v502 = vpop.f32.mrb[0].mxu0
    %v503 = vadd.f32 %v385, %v502
    %v504 = vpop.f32.mrb[0].mxu0
    %505 = vmatprep.mubr.bf16.mxu0 %v463
    %506 = vmatmul.mubr.bf16.gmra.mrb[0].mxu0 %v354
    %v507 = vpop.f32.mrb[0].mxu0
    %v508 = vadd.f32 %v385, %v507
    %v509 = vpop.f32.mrb[0].mxu0
    %v510 = vpop.f32.mrb[0].mxu0
    %v511 = vadd.f32 %v385, %v510
    %v512 = vpop.f32.mrb[0].mxu0
    %513 = vdwg.mxu0
    %v514 = vmax.f32 %v500, 0.0
    %v515 = vmax.f32 %v503, 0.0
    %v516 = vmax.f32 %v508, 0.0
    %v517 = vmax.f32 %v511, 0.0
    %v518 = vpack.c.bf16 %v515, %v514
    %v519 = vpack.c.bf16 %v517, %v516
    %v520 = vld [vmem:[%s5] sm:$0xff]
    %v521 = vld [vmem:[%s5 + $0x8] sm:$0xff]
    %v522 = vld [vmem:[%s5 + $0x10] sm:$0xff]
    %v523 = vld [vmem:[%s5 + $0x18] sm:$0xff]
    %v524 = vld [vmem:[%s5 + $0x20] sm:$0xff]
    %v525 = vld [vmem:[%s5 + $0x28] sm:$0xff]
    %v526 = vld [vmem:[%s5 + $0x30] sm:$0xff]
    %v527 = vld [vmem:[%s5 + $0x38] sm:$0xff]
    %v528 = vld [vmem:[%s6] sm:$0x3]
    %v530 = vlaneseq
    %v531 = vshrl.u32 %v530, 7
    %v532 = vsub.s32 0, %v531
    %v533 = vrot.slane %v528, %v532
    %v534 = vlaneseq
    %v535 = vshrl.u32 %v534, 7
    %v536 = vsub.s32 1, %v535
    %v537 = vrot.slane %v528, %v536
    %v548 = vunpack.c.l.b16 %v520
    %v549 = vunpack.c.h.b16 %v520
    %v550 = vunpack.c.l.b16 %v521
    %v551 = vunpack.c.h.b16 %v521
    %v552 = vunpack.c.l.b16 %v522
    %v553 = vunpack.c.h.b16 %v522
    %v554 = vunpack.c.l.b16 %v523
    %v555 = vunpack.c.h.b16 %v523
    %v556 = vunpack.c.l.b16 %v524
    %v557 = vunpack.c.h.b16 %v524
    %v558 = vunpack.c.l.b16 %v525
    %v559 = vunpack.c.h.b16 %v525
    %v560 = vunpack.c.l.b16 %v526
    %v561 = vunpack.c.h.b16 %v526
    %v562 = vunpack.c.l.b16 %v527
    %v563 = vunpack.c.h.b16 %v527
    %v564 = vpack.c.b16 %v550, %v548
    %v565 = vpack.c.b16 %v551, %v549
    %v566 = vpack.c.b16 %v554, %v552
    %v567 = vpack.c.b16 %v555, %v553
    %v568 = vpack.c.b16 %v558, %v556
    %v569 = vpack.c.b16 %v559, %v557
    %v570 = vpack.c.b16 %v562, %v560
    %v571 = vpack.c.b16 %v563, %v561
    %v581 = vsel %vm347, %v518, 0
    %v584 = vsel %vm347, %v519, 0
    %586 = vmatprep.subr.bf16.mxu0 %v565
    %587 = vmatpush1.bf16.msra.mxu0 %v564
    %588 = vmatprep.subr.bf16.mxu0 %v567
    %589 = vmatpush1.bf16.msra.mxu0 %v566
    %590 = vmatprep.subr.bf16.mxu0 %v569
    %591 = vmatpush1.bf16.msra.mxu0 %v568
    %592 = vmatprep.subr.bf16.mxu0 %v571
    %593 = vmatpush1.bf16.msra.mxu0 %v570
    %594 = vmatprep.subr.bf16.mxu0 0
    %595 = vmatpush1.bf16.msra.mxu0 0
    %596 = vmatprep.subr.bf16.mxu0 0
    %597 = vmatpush1.bf16.msra.mxu0 0
    %598 = vmatprep.subr.bf16.mxu0 0
    %599 = vmatpush1.bf16.msra.mxu0 0
    %600 = vmatprep.subr.bf16.mxu0 0
    %601 = vmatpush1.bf16.msra.mxu0 0
    %602 = vmatprep.subr.bf16.mxu0 0
    %603 = vmatpush1.bf16.msra.mxu0 0
    %604 = vmatprep.subr.bf16.mxu0 0
    %605 = vmatpush1.bf16.msra.mxu0 0
    %606 = vmatprep.subr.bf16.mxu0 0
    %607 = vmatpush1.bf16.msra.mxu0 0
    %608 = vmatprep.subr.bf16.mxu0 0
    %609 = vmatpush1.bf16.msra.mxu0 0
    %610 = vmatprep.subr.bf16.mxu0 0
    %611 = vmatpush1.bf16.msra.mxu0 0
    %612 = vmatprep.subr.bf16.mxu0 0
    %613 = vmatpush1.bf16.msra.mxu0 0
    %614 = vmatprep.subr.bf16.mxu0 0
    %615 = vmatpush1.bf16.msra.mxu0 0
    %616 = vmatprep.subr.bf16.mxu0 0
    %617 = vmatpush1.bf16.msra.mxu0 0
    %618 = vmatprep.mubr.bf16.mxu0 0
    %619 = vmatmul.mubr.bf16.gmra.mrb[0].mxu0 %v581
    %v620 = vpop.f32.mrb[0].mxu0
    %v621 = vadd.f32 %v533, %v620
    %v622 = vpop.f32.mrb[0].mxu0
    %v623 = vadd.f32 %v537, %v622
    %v624 = vpop.f32.mrb[0].mxu0
    %v625 = vadd.f32 %v533, %v624
    %v626 = vpop.f32.mrb[0].mxu0
    %v627 = vadd.f32 %v537, %v626
    %628 = vmatprep.mubr.bf16.mxu0 0
    %629 = vmatmul.mubr.bf16.gmra.mrb[0].mxu0 %v584
    %v630 = vpop.f32.mrb[0].mxu0
    %v631 = vadd.f32 %v533, %v630
    %v632 = vpop.f32.mrb[0].mxu0
    %v633 = vadd.f32 %v537, %v632
    %v634 = vpop.f32.mrb[0].mxu0
    %v635 = vadd.f32 %v533, %v634
    %v636 = vpop.f32.mrb[0].mxu0
    %v637 = vadd.f32 %v537, %v636
    %638 = vdwg.mxu0
    %v639 = vadd.f32 %v621, %v28
    %v640 = vadd.f32 %v623, %v29
    %v641 = vadd.f32 %v625, %v30
    %v642 = vadd.f32 %v627, %v31
    %v643 = vadd.f32 %v631, %v32
    %v644 = vadd.f32 %v633, %v33
    %v645 = vadd.f32 %v635, %v34
    %v646 = vadd.f32 %v637, %v35
    %v647 = vmax.f32 %v639, 0.0
    %v648 = vmax.f32 %v640, 0.0
    %v649 = vmax.f32 %v641, 0.0
    %v650 = vmax.f32 %v642, 0.0
    %v651 = vmax.f32 %v643, 0.0
    %v652 = vmax.f32 %v644, 0.0
    %v653 = vmax.f32 %v645, 0.0
    %v654 = vmax.f32 %v646, 0.0
    %655 = vst [vmem:[#allocation2] sm:$0xff] %v647
    %656 = vst [vmem:[#allocation2 + $0x8] sm:$0xff] %v648
    %657 = vst [vmem:[#allocation2 + $0x10] sm:$0xff] %v649
    %658 = vst [vmem:[#allocation2 + $0x18] sm:$0xff] %v650
    %659 = vst [vmem:[#allocation2 + $0x20] sm:$0xff] %v651
    %660 = vst [vmem:[#allocation2 + $0x28] sm:$0xff] %v652
    %661 = vst [vmem:[#allocation2 + $0x30] sm:$0xff] %v653
    %662 = vst [vmem:[#allocation2 + $0x38] sm:$0xff] %v654
    // Predicated region
    $region30: #{tpu_custom_call.1} parent=1 // pred_check
      _
    $region31: #{tpu_custom_call.1} parent=1 // pred_check_branch
      %664 = sbr.rel (0) target = $region33
    $region32: #{tpu_custom_call.1} parent=1 // pred_region
      %s666 = ssub.s32 1024, 1024
      %667 = vsyncadd [#allocation3], %s666
      %s668 = sshll.u32 [#allocation2], 4
      %s669 = int_to_ptr.vmem [resolvable:$true] %s668
      %674 = dma.vmem_to_hbm [thread:$0]  %s669, 1024, %s7, [#allocation3], 256, 256, 16
    $region33: #{tpu_custom_call.1} parent=1 // pred_fallthru
      _
    // Predicated region
    $region34: #{tpu_custom_call.1} parent=1 // pred_check
      _
    $region35: #{tpu_custom_call.1} parent=1 // pred_check_branch
      %676 = sbr.rel (0) target = $region37
    $region36: #{tpu_custom_call.1} parent=1 // pred_region
      %677 = dma.done [#allocation3], 1024
    $region37: #{tpu_custom_call.1} parent=1 // pred_fallthru
      _
    %678 = vsyncpa [#allocation3], 1

</llo_original>
